<compile_context>
chip_gen: v6e
topology: v6e:2x2x1
jax: 0.10.0
libtpu: 0.0.40
codegen_flags: <defaults>
</compile_context>

<pallas_src>
import math

import numpy as np
import jax
import jax.numpy as jnp
from jax.experimental import pallas as pl
from jax.experimental.pallas import tpu as pltpu


def _round_up(x, m):
    return ((x + m - 1) // m) * m


def _pad2(x, rows, cols):
    pr, pc = rows - x.shape[0], cols - x.shape[1]
    if pr or pc:
        x = jnp.pad(x, ((0, pr), (0, pc)))
    return x


def _proj_relu_kernel(x_ref, w_ref, b_ref, o_ref, acc_ref):
    # x_ref  : [tm, tk] bf16   tile of rel_emb.weight
    # w_ref  : [tk, tn] bf16   tile of rel_proj.weight^T
    # b_ref  : [1,  tn] f32    bias tile
    # o_ref  : [tm, tn] f32    output tile (same tile across the K axis)
    # acc_ref: [tm, tn] f32    VMEM accumulator, persists across K grid steps
    k = pl.program_id(2)

    @pl.when(k == 0)
    def _():
        # Fold the bias into the accumulator init: sublane-broadcast of the
        # [1, tn] bias row across tm rows.
        acc_ref[...] = jnp.broadcast_to(b_ref[...], acc_ref.shape)

    acc_ref[...] += jnp.dot(x_ref[...], w_ref[...],
                            preferred_element_type=jnp.float32)

    @pl.when(k == pl.num_programs(2) - 1)
    def _():
        o_ref[...] = jnp.maximum(acc_ref[...], 0.0)


def encoder_rel_base_forward(params, triplets=None, *, tm=256, tn=256, tk=512):
    """Pallas forward of Encoder_Rel_base: ReLU(rel_emb.weight @ rel_proj.W^T + b).

    `triplets` is accepted for API parity with the PyTorch module but, exactly
    as in the reference forward, it is not used.
    """
    del triplets
    emb = params["rel_emb_weight"]          # [R, D] f32
    w = params["rel_proj_w"]                # [H, D] f32
    b = params["rel_proj_b"]                # [H]    f32
    M, K = emb.shape
    N = w.shape[0]

    # bf16 MXU operands (f32 accumulation inside the kernel).
    x = emb.astype(jnp.bfloat16)
    wt = w.T.astype(jnp.bfloat16)           # [D, H]
    b2 = b.astype(jnp.float32).reshape(1, N)

    # Cap tiles at the (aligned) problem size, then zero-pad to tile multiples.
    tm = min(tm, _round_up(M, 16))          # 16: bf16 sublane packing
    tn = min(tn, _round_up(N, 128))
    tk = min(tk, _round_up(K, 128))
    Mp, Kp, Np = _round_up(M, tm), _round_up(K, tk), _round_up(N, tn)
    x = _pad2(x, Mp, Kp)
    wt = _pad2(wt, Kp, Np)
    b2 = _pad2(b2, 1, Np)

    grid = (Mp // tm, Np // tn, Kp // tk)

    out = pl.pallas_call(
        _proj_relu_kernel,
        out_shape=jax.ShapeDtypeStruct((Mp, Np), jnp.float32),
        grid_spec=pltpu.PrefetchScalarGridSpec(
            num_scalar_prefetch=0,
            grid=grid,
            in_specs=[
                pl.BlockSpec((tm, tk), lambda i, j, k: (i, k)),
                pl.BlockSpec((tk, tn), lambda i, j, k: (k, j)),
                pl.BlockSpec((1, tn), lambda i, j, k: (0, j)),
            ],
            out_specs=pl.BlockSpec((tm, tn), lambda i, j, k: (i, j)),
            scratch_shapes=[pltpu.VMEM((tm, tn), jnp.float32)],
        ),
        compiler_params=pltpu.CompilerParams(
            dimension_semantics=("parallel", "parallel", "arbitrary")),
    )(x, wt, b2)

    return out[:M, :N]


def reference_forward(params):
    """Pure-JAX reference mirroring the PyTorch forward.

    Operands are rounded to bf16 to match the MXU operand precision used by
    the kernel; accumulation and the bias/ReLU epilogue are f32.
    """
    x = params["rel_emb_weight"].astype(jnp.bfloat16)
    wt = params["rel_proj_w"].T.astype(jnp.bfloat16)
    y = jnp.dot(x, wt, preferred_element_type=jnp.float32) + params["rel_proj_b"]
    return jnp.maximum(y, 0.0)


def _xavier_normal(key, shape, fan_in, fan_out, gain):
    std = gain * math.sqrt(2.0 / (fan_in + fan_out))
    return (std * jax.random.normal(key, shape)).astype(jnp.float32)


if __name__ == "__main__":
    # Small shapes consistent with the module.
    aug_num_rels, rel_emb_dim, hid_dim_rel = 256, 256, 256
    gain = math.sqrt(2.0)  # nn.init.calculate_gain('relu')

    key = jax.random.PRNGKey(0)
    k_emb, k_proj, k_trip = jax.random.split(key, 3)
    params = {
        # nn.Embedding weight [num_rels, emb_dim]: fan_in=emb_dim, fan_out=num_rels
        "rel_emb_weight": _xavier_normal(k_emb, (aug_num_rels, rel_emb_dim),
                                         rel_emb_dim, aug_num_rels, gain),
        # nn.Linear weight [out, in]: fan_in=in, fan_out=out
        "rel_proj_w": _xavier_normal(k_proj, (hid_dim_rel, rel_emb_dim),
                                     rel_emb_dim, hid_dim_rel, gain),
        "rel_proj_b": jnp.zeros((hid_dim_rel,), jnp.float32),
    }
    # Triplets are accepted but unused by the forward (matches the PyTorch module).
    triplets = jax.random.randint(k_trip, (64, 3), 0, aug_num_rels, dtype=jnp.int32)

    # Small tiles so the demo exercises a multi-step (2, 2, 2) grid including
    # the K-axis accumulator path; at production sizes use the larger defaults.
    out = encoder_rel_base_forward(params, triplets, tm=128, tn=128, tk=128)
    out = jax.block_until_ready(out)

    ref = reference_forward(params)
    np.testing.assert_allclose(np.asarray(out), np.asarray(ref),
                               rtol=1e-4, atol=1e-5)
    print("KERNEL_OK")
</pallas_src>

<mosaic_0001>
module attributes {stable_mosaic.version = 11 : i64} {
  func.func @_proj_relu_kernel(%arg0: i32, %arg1: i32, %arg2: i32, %arg3: memref<128x128xbf16, #tpu.memory_space<vmem>>, %arg4: memref<128x128xbf16, #tpu.memory_space<vmem>>, %arg5: memref<1x128xf32, #tpu.memory_space<vmem>>, %arg6: memref<128x128xf32, #tpu.memory_space<vmem>>, %arg7: memref<128x128xf32, #tpu.memory_space<vmem>>) attributes {dimension_semantics = [#tpu.dimension_semantics<parallel>, #tpu.dimension_semantics<parallel>, #tpu.dimension_semantics<arbitrary>], iteration_bounds = array<i64: 2, 2, 2>, scalar_prefetch = 0 : i64, scratch_operands = 1 : i64, tpu.core_type = #tpu.core_type<tc>, window_params = [{transform_indices = @transform_0, window_bounds = array<i64: 128, 128>}, {transform_indices = @transform_1, window_bounds = array<i64: 128, 128>}, {transform_indices = @transform_2, window_bounds = array<i64: 1, 128>}, {transform_indices = @transform_3, window_bounds = array<i64: 128, 128>}]} {
    %c0_i32 = arith.constant 0 : i32
    %0 = arith.cmpi eq, %arg2, %c0_i32 : i32
    %1 = arith.extui %0 : i1 to i32
    %c0_i32_0 = arith.constant 0 : i32
    %2 = arith.cmpi ne, %1, %c0_i32_0 : i32
    scf.if %2 {
      %c0_9 = arith.constant 0 : index
      %c0_10 = arith.constant 0 : index
      %12 = vector.load %arg5[%c0_9, %c0_10] : memref<1x128xf32, #tpu.memory_space<vmem>>, vector<1x128xf32>
      %13 = vector.shape_cast %12 : vector<1x128xf32> to vector<1x128xf32>
      %14 = vector.broadcast %13 : vector<1x128xf32> to vector<128x128xf32>
      %c0_11 = arith.constant 0 : index
      %c0_12 = arith.constant 0 : index
      %15 = vector.load %arg7[%c0_11, %c0_12] : memref<128x128xf32, #tpu.memory_space<vmem>>, vector<128x128xf32>
      tpu.vector_store %arg7[%c0_11, %c0_12], %14 {strides = array<i32>} : memref<128x128xf32, #tpu.memory_space<vmem>>, vector<128x128xf32>,
    } else {
    }
    %c0 = arith.constant 0 : index
    %c0_1 = arith.constant 0 : index
    %3 = vector.load %arg7[%c0, %c0_1] : memref<128x128xf32, #tpu.memory_space<vmem>>, vector<128x128xf32>
    %c0_2 = arith.constant 0 : index
    %c0_3 = arith.constant 0 : index
    %4 = vector.load %arg3[%c0_2, %c0_3] : memref<128x128xbf16, #tpu.memory_space<vmem>>, vector<128x128xbf16>
    %c0_4 = arith.constant 0 : index
    %c0_5 = arith.constant 0 : index
    %5 = vector.load %arg4[%c0_4, %c0_5] : memref<128x128xbf16, #tpu.memory_space<vmem>>, vector<128x128xbf16>
    %cst = arith.constant dense<0.000000e+00> : vector<128x128xf32>
    %6 = tpu.matmul %4, %5, %cst {dimension_numbers = #tpu.dot_dimension_numbers<[1], [0], [0], [1], [0, 0, 1, 1], [], []>} : vector<128x128xbf16>, vector<128x128xbf16>, vector<128x128xf32> -> vector<128x128xf32>
    %7 = arith.addf %3, %6 : vector<128x128xf32>
    %c0_6 = arith.constant 0 : index
    %c0_7 = arith.constant 0 : index
    %8 = vector.load %arg7[%c0_6, %c0_7] : memref<128x128xf32, #tpu.memory_space<vmem>>, vector<128x128xf32>
    tpu.vector_store %arg7[%c0_6, %c0_7], %7 {strides = array<i32>} : memref<128x128xf32, #tpu.memory_space<vmem>>, vector<128x128xf32>,
    %c1_i32 = arith.constant 1 : i32
    %9 = arith.cmpi eq, %arg2, %c1_i32 : i32
    %10 = arith.extui %9 : i1 to i32
    %c0_i32_8 = arith.constant 0 : i32
    %11 = arith.cmpi ne, %10, %c0_i32_8 : i32
    scf.if %11 {
      %c0_9 = arith.constant 0 : index
      %c0_10 = arith.constant 0 : index
      %12 = vector.load %arg7[%c0_9, %c0_10] : memref<128x128xf32, #tpu.memory_space<vmem>>, vector<128x128xf32>
      %cst_11 = arith.constant 0.000000e+00 : f32
      %13 = vector.broadcast %cst_11 : f32 to vector<128x128xf32>
      %14 = arith.maximumf %12, %13 : vector<128x128xf32>
      %c0_12 = arith.constant 0 : index
      %c0_13 = arith.constant 0 : index
      %15 = vector.load %arg6[%c0_12, %c0_13] : memref<128x128xf32, #tpu.memory_space<vmem>>, vector<128x128xf32>
      tpu.vector_store %arg6[%c0_12, %c0_13], %14 {strides = array<i32>} : memref<128x128xf32, #tpu.memory_space<vmem>>, vector<128x128xf32>,
    } else {
    }
    return
  }
  func.func @transform_0(%arg0: i32, %arg1: i32, %arg2: i32) -> (i32, i32) {
    %c0_i32 = arith.constant 0 : i32
    return %arg0, %arg2 : i32, i32
  }
  func.func @transform_1(%arg0: i32, %arg1: i32, %arg2: i32) -> (i32, i32) {
    %c0_i32 = arith.constant 0 : i32
    return %arg2, %arg1 : i32, i32
  }
  func.func @transform_2(%arg0: i32, %arg1: i32, %arg2: i32) -> (i32, i32) {
    %c0_i32 = arith.constant 0 : i32
    %c0_i32_0 = arith.constant 0 : i32
    return %c0_i32, %arg1 : i32, i32
  }
  func.func @transform_3(%arg0: i32, %arg1: i32, %arg2: i32) -> (i32, i32) {
    %c0_i32 = arith.constant 0 : i32
    return %arg0, %arg1 : i32, i32
  }
}

</mosaic_0001>

<llo_original>
// kernel: tpu_custom_call.1
$region0: #{tpu_custom_call.1}
  #allocation0 [shape = 'u32[]', space=smem, size = 0x4, offset = 0x4, fixed_abs, tag = 'smem constant byte address 0x4 - core index']
  #allocation1 [shape = 'u32[144,128]{1,0:T(1,128)}', space=vmem, size = 0x12000, scoped, tag = 'internal scratch']
  #allocation2 [shape = 'f32[128,128]{1,0:T(8,128)}', space=vmem, size = 0x10000, scoped, tag = 'scratch operand']
  %s0 = inlined_call_operand.hbm [shape: bf16[256,256], index: 0, kind: input, shape index: {}]
  %s1 = inlined_call_operand.hbm [shape: bf16[256,256], index: 1, kind: input, shape index: {}]
  %s2 = inlined_call_operand.vmem [shape: f32[1,256], index: 2, kind: input, shape index: {}]
  %s3 = inlined_call_operand.hbm [shape: f32[256,256], index: 3, kind: output, shape index: {}]
  %s4 = sld [smem:[#allocation0]]
  $region61: #{tpu_custom_call.1} parent=0
    _
  %s6 = ssub.s32 1, %s4
  %s7 = scalar_select 0, %s6, %s4
  $region1: #{tpu_custom_call.1} parent=0
    #allocation3 [shape = 'u8[65536]{0}', space=vmem, size = 0x10000, scoped, tag = 'input window, operand 0']
    #allocation4 [shape = 's32[2]{0}', space=sflag, size = 0x8, scoped, tag = 'scoped memory for tpu_custom_call.1']
    #allocation5 [shape = 's32[2]{0}', space=sflag, size = 0x8, scoped, tag = 'scoped memory for tpu_custom_call.1']
    #allocation6 [shape = 'u8[65536]{0}', space=vmem, size = 0x10000, scoped, tag = 'input window, operand 1']
    #allocation7 [shape = 's32[2]{0}', space=sflag, size = 0x8, scoped, tag = 'scoped memory for tpu_custom_call.1']
    #allocation8 [shape = 'u8[131072]{0}', space=vmem, size = 0x20000, scoped, tag = 'output window, operand 0']
    %8 = vsyncpa [#allocation4], 0
    %s9 = scalar_lea.sflag [#allocation4], 1
    %10 = vsyncpa %s9, 0
    %11 = vsyncpa [#allocation7], 0
    %s12 = scalar_lea.sflag [#allocation7], 1
    %13 = vsyncpa %s12, 0
    %14 = vsyncpa [#allocation5], 0
    %s15 = scalar_lea.sflag [#allocation5], 1
    %16 = vsyncpa %s15, 0
    loop: start=0, step=1, limit=10
    $region2: #{tpu_custom_call.1} parent=1 // loop_pre_header
      _
    $region3: #{tpu_custom_call.1} parent=1 // loop_header
      %s18 = sphi 0, %s22
      %p19 = scmp.ge.s32.totalorder %s18, 10
      %s25 = sphi 0, %s44
      %s26 = sphi 0, %s40
      %s27 = sphi 0, %s36
      %s28 = sphi 0, %s25
      %s29 = sphi 0, %s26
      %s30 = sphi 0, %s27
      %s31 = sphi 0, %s28
      %s32 = sphi 0, %s29
      %s33 = sphi 0, %s30
      %s49 = sphi 0, %s51
      %s52 = sphi 0, %s49
      %s53 = sphi 0, %s52
      %s69 = sphi 0, %s53
      %s77 = sphi 0, %s79
      %s80 = sphi 0, %s77
      %s81 = sphi 0, %s80
      %s97 = sphi 0, %s81
      %s103 = sphi 0, %s105
      %s106 = sphi 0, %s103
      %s107 = sphi 0, %s106
      %s123 = sphi 0, %s107
      %s131 = sphi 0, %s133
      %s134 = sphi 0, %s131
      %s135 = sphi 0, %s134
      %s151 = sphi 0, %s135
    $region4: #{tpu_custom_call.1} parent=1 // loop_header_branch
      %21 = sbr.rel (%p19) target = $region8
    $region5: #{tpu_custom_call.1} parent=1 // loop_body
      %s23 = ssub.s32 %s18, 1
      %s24 = ssub.s32 %s18, 2
      %s34 = sadd.s32 1, %s27
      %p35 = scmp.ge.s32.totalorder %s34, 2
      %s36 = scalar_select %p35, 0, %s34
      %s37 = sadd.s32 1, %s26
      %s38 = scalar_select %p35, %s37, %s26
      %p39 = scmp.ge.s32.totalorder %s38, 2
      %s40 = scalar_select %p39, 0, %s38
      %s41 = sadd.s32 1, %s25
      %s42 = scalar_select %p39, %s41, %s25
      %p43 = scmp.ge.s32.totalorder %s42, 2
      %s44 = scalar_select %p43, 0, %s42
      %s45 = ssub.s32 %s25, %s44
      %s46 = ssub.s32 %s27, %s36
      %s47 = sor.u32 %s45, %s46
      %p48 = scmp.eq.s32.totalorder %s47, 0
      %s50 = sadd.s32 %s49, 1
      %s51 = scalar_select %p48, %s49, %s50
      %p54 = pneg %p48
      %p55 = scmp.eq.s32.totalorder %s18, 7
      %p56 = por %p54, %p55
      %p57 = scmp.ne.s32.totalorder %s49, %s52
      %p58 = scmp.eq.s32.totalorder %s18, 0
      %p59 = por %p57, %p58
      %p60 = scmp.ne.s32.totalorder %s49, %s52
      %p61 = scmp.eq.s32.totalorder %s23, 7
      %p62 = por %p60, %p61
      %p63 = scmp.ne.s32.totalorder %s52, %s53
      %p64 = scmp.eq.s32.totalorder %s23, 0
      %p65 = por %p63, %p64
      %p66 = scmp.ne.s32.totalorder %s52, %s53
      %p67 = scmp.eq.s32.totalorder %s24, 7
      %p68 = por %p66, %p67
      %p70 = scmp.ne.s32.totalorder %s53, %s69
      %p71 = scmp.eq.s32.totalorder %s24, 0
      %p72 = por %p70, %p71
      %s73 = ssub.s32 %s27, %s36
      %s74 = ssub.s32 %s26, %s40
      %s75 = sor.u32 %s73, %s74
      %p76 = scmp.eq.s32.totalorder %s75, 0
      %s78 = sadd.s32 %s77, 1
      %s79 = scalar_select %p76, %s77, %s78
      %p82 = pneg %p76
      %p83 = scmp.eq.s32.totalorder %s18, 7
      %p84 = por %p82, %p83
      %p85 = scmp.ne.s32.totalorder %s77, %s80
      %p86 = scmp.eq.s32.totalorder %s18, 0
      %p87 = por %p85, %p86
      %p88 = scmp.ne.s32.totalorder %s77, %s80
      %p89 = scmp.eq.s32.totalorder %s23, 7
      %p90 = por %p88, %p89
      %p91 = scmp.ne.s32.totalorder %s80, %s81
      %p92 = scmp.eq.s32.totalorder %s23, 0
      %p93 = por %p91, %p92
      %p94 = scmp.ne.s32.totalorder %s80, %s81
      %p95 = scmp.eq.s32.totalorder %s24, 7
      %p96 = por %p94, %p95
      %p98 = scmp.ne.s32.totalorder %s81, %s97
      %p99 = scmp.eq.s32.totalorder %s24, 0
      %p100 = por %p98, %p99
      %s101 = ssub.s32 %s26, %s40
      %p102 = scmp.eq.s32.totalorder %s101, 0
      %s104 = sadd.s32 %s103, 1
      %s105 = scalar_select %p102, %s103, %s104
      %p108 = pneg %p102
      %p109 = scmp.eq.s32.totalorder %s18, 7
      %p110 = por %p108, %p109
      %p111 = scmp.ne.s32.totalorder %s103, %s106
      %p112 = scmp.eq.s32.totalorder %s18, 0
      %p113 = por %p111, %p112
      %p114 = scmp.ne.s32.totalorder %s103, %s106
      %p115 = scmp.eq.s32.totalorder %s23, 7
      %p116 = por %p114, %p115
      %p117 = scmp.ne.s32.totalorder %s106, %s107
      %p118 = scmp.eq.s32.totalorder %s23, 0
      %p119 = por %p117, %p118
      %p120 = scmp.ne.s32.totalorder %s106, %s107
      %p121 = scmp.eq.s32.totalorder %s24, 7
      %p122 = por %p120, %p121
      %p124 = scmp.ne.s32.totalorder %s107, %s123
      %p125 = scmp.eq.s32.totalorder %s24, 0
      %p126 = por %p124, %p125
      %s127 = ssub.s32 %s25, %s44
      %s128 = ssub.s32 %s26, %s40
      %s129 = sor.u32 %s127, %s128
      %p130 = scmp.eq.s32.totalorder %s129, 0
      %s132 = sadd.s32 %s131, 1
      %s133 = scalar_select %p130, %s131, %s132
      %p136 = pneg %p130
      %p137 = scmp.eq.s32.totalorder %s18, 7
      %p138 = por %p136, %p137
      %p139 = scmp.ne.s32.totalorder %s131, %s134
      %p140 = scmp.eq.s32.totalorder %s18, 0
      %p141 = por %p139, %p140
      %p142 = scmp.ne.s32.totalorder %s131, %s134
      %p143 = scmp.eq.s32.totalorder %s23, 7
      %p144 = por %p142, %p143
      %p145 = scmp.ne.s32.totalorder %s134, %s135
      %p146 = scmp.eq.s32.totalorder %s23, 0
      %p147 = por %p145, %p146
      %p148 = scmp.ne.s32.totalorder %s134, %s135
      %p149 = scmp.eq.s32.totalorder %s24, 7
      %p150 = por %p148, %p149
      %p152 = scmp.ne.s32.totalorder %s135, %s151
      %p153 = scmp.eq.s32.totalorder %s24, 0
      %p154 = por %p152, %p153
      %p155 = scmp.le.s32.totalorder 1, %s18
      %p156 = scmp.lt.s32.totalorder %s18, 9
      %p157 = pnand %p155, %p156
      %p158 = pneg %p157
      // Predicated region
      $region9: #{tpu_custom_call.1} parent=5 // pred_check
        _
      $region10: #{tpu_custom_call.1} parent=5 // pred_check_branch
        %160 = sbr.rel (%p157) target = $region12
      $region11: #{tpu_custom_call.1} parent=5 // pred_region
        %s161 = ssub.s32 %s18, 1
      $region12: #{tpu_custom_call.1} parent=5 // pred_fallthru
        _
      %p162 = scmp.lt.s32.totalorder %s18, 8
      // Predicated region
      $region13: #{tpu_custom_call.1} parent=5 // pred_check
        %p163 = pneg %p162
      $region14: #{tpu_custom_call.1} parent=5 // pred_check_branch
        %165 = sbr.rel (%p163) target = $region16
      $region15: #{tpu_custom_call.1} parent=5 // pred_region
        // Predicated region
        $region17: #{tpu_custom_call.1} parent=15 // pred_check
          %p166 = pneg %p59
        $region18: #{tpu_custom_call.1} parent=15 // pred_check_branch
          %168 = sbr.rel (%p166) target = $region20
        $region19: #{tpu_custom_call.1} parent=15 // pred_region
          %s169 = sand.u32 %s49, 1
          %s170 = scalar_lea.sflag [#allocation4], %s169
          %s171 = sand.u32 %s49, 1
          %s172 = smul.addr %s171, 64
          %s173 = scalar_lea.vmem [#allocation3], %s172
          %s174 = smul.u32 16, %s25
          %s176 = ssub.s32 1024, 1024
          %177 = vsyncadd %s170, %s176
          %s178 = smul.addr %s174, 2
          %s179 = sadd.s32 %s27, %s178
          %s180 = smul.addr %s179, 64
          %s181 = scalar_lea.hbm %s0, %s180
          %s182 = sshll.u32 %s173, 4
          %s183 = int_to_ptr.vmem [resolvable:$true] %s182
          %188 = dma.hbm_to_vmem [thread:$0]  %s181, 1024, %s183, %s170, 128, 64, 4
        $region20: #{tpu_custom_call.1} parent=15 // pred_fallthru
          _
        // Predicated region
        $region21: #{tpu_custom_call.1} parent=15 // pred_check
          %p189 = pneg %p87
        $region22: #{tpu_custom_call.1} parent=15 // pred_check_branch
          %191 = sbr.rel (%p189) target = $region24
        $region23: #{tpu_custom_call.1} parent=15 // pred_region
          %s192 = sand.u32 %s77, 1
          %s193 = scalar_lea.sflag [#allocation7], %s192
          %s194 = sand.u32 %s77, 1
          %s195 = smul.addr %s194, 64
          %s196 = scalar_lea.vmem [#allocation6], %s195
          %s197 = smul.u32 16, %s27
          %s199 = ssub.s32 1024, 1024
          %200 = vsyncadd %s193, %s199
          %s201 = smul.addr %s197, 2
          %s202 = sadd.s32 %s26, %s201
          %s203 = smul.addr %s202, 64
          %s204 = scalar_lea.hbm %s1, %s203
          %s205 = sshll.u32 %s196, 4
          %s206 = int_to_ptr.vmem [resolvable:$true] %s205
          %211 = dma.hbm_to_vmem [thread:$0]  %s204, 1024, %s206, %s193, 128, 64, 4
        $region24: #{tpu_custom_call.1} parent=15 // pred_fallthru
          _
        // Predicated region
        $region25: #{tpu_custom_call.1} parent=15 // pred_check
          %p212 = pneg %p113
        $region26: #{tpu_custom_call.1} parent=15 // pred_check_branch
          %214 = sbr.rel (%p212) target = $region28
        $region27: #{tpu_custom_call.1} parent=15 // pred_region
          %p215 = scmp.lt.s32.totalorder %s26, 1
          %s216 = scalar_select %p215, %s26, 1
          %s217 = scalar_lea.vmem %s2, %s216
        $region28: #{tpu_custom_call.1} parent=15 // pred_fallthru
          _
      $region16: #{tpu_custom_call.1} parent=5 // pred_fallthru
        _
      %p218 = scmp.le.s32.totalorder 1, %s18
      %p219 = scmp.lt.s32.totalorder %s18, 9
      %p220 = pnand %p218, %p219
      %p221 = pneg %p220
      // Predicated region
      $region29: #{tpu_custom_call.1} parent=5 // pred_check
        _
      $region30: #{tpu_custom_call.1} parent=5 // pred_check_branch
        %223 = sbr.rel (%p220) target = $region32
      $region31: #{tpu_custom_call.1} parent=5 // pred_region
        %s224 = ssub.s32 %s18, 1
        %s225 = sand.u32 %s52, 1
        %s226 = scalar_lea.sflag [#allocation4], %s225
        %s227 = sand.u32 %s52, 1
        %s228 = smul.addr %s227, 64
        %s229 = scalar_lea.vmem [#allocation3], %s228
        // Predicated region
        $region33: #{tpu_custom_call.1} parent=31 // pred_check
          %p230 = pneg %p65
        $region34: #{tpu_custom_call.1} parent=31 // pred_check_branch
          %232 = sbr.rel (%p230) target = $region36
        $region35: #{tpu_custom_call.1} parent=31 // pred_region
          %233 = dma.done %s226, 1024
        $region36: #{tpu_custom_call.1} parent=31 // pred_fallthru
          _
        %s234 = sand.u32 %s80, 1
        %s235 = scalar_lea.sflag [#allocation7], %s234
        %s236 = sand.u32 %s80, 1
        %s237 = smul.addr %s236, 64
        %s238 = scalar_lea.vmem [#allocation6], %s237
        // Predicated region
        $region37: #{tpu_custom_call.1} parent=31 // pred_check
          %p239 = pneg %p93
        $region38: #{tpu_custom_call.1} parent=31 // pred_check_branch
          %241 = sbr.rel (%p239) target = $region40
        $region39: #{tpu_custom_call.1} parent=31 // pred_region
          %242 = dma.done %s235, 1024
        $region40: #{tpu_custom_call.1} parent=31 // pred_fallthru
          _
        %s243 = sand.u32 %s52, 1
        %s244 = scalar_lea.sflag [#allocation4], %s243
        %s245 = sand.u32 %s52, 1
        %s246 = smul.addr %s245, 64
        %s247 = scalar_lea.vmem [#allocation3], %s246
        %p248 = pneg %p65
        %p249 = pneg %p62
        %s250 = sand.u32 %s80, 1
        %s251 = scalar_lea.sflag [#allocation7], %s250
        %s252 = sand.u32 %s80, 1
        %s253 = smul.addr %s252, 64
        %s254 = scalar_lea.vmem [#allocation6], %s253
        %p255 = pneg %p93
        %p256 = pneg %p90
        %p257 = scmp.lt.s32.totalorder %s29, 1
        %s258 = scalar_select %p257, %s29, 1
        %s259 = scalar_lea.vmem %s2, %s258
        %p260 = pneg %p119
        %p261 = pneg %p116
        %p262 = pneg %p147
        %p263 = pneg %p144
        %s264 = sand.u32 %s134, 1
        %s265 = scalar_lea.sflag [#allocation5], %s264
        %s266 = sand.u32 %s134, 1
        %s267 = smul.addr %s266, 128
        %s268 = scalar_lea.vmem [#allocation8], %s267
        %s269 = smul.u32 16, %s28
        %s270 = smul.u32 16, %s30
        %p271 = scmp.lt.s32.totalorder %s29, 1
        %s272 = scalar_select %p271, %s29, 1
        %s273 = scalar_lea.vmem %s2, %s272
        %s274 = smul.u32 16, %s28
        %p276 = scmp.eq.s32.totalorder %s30, 0
        // Predicated region
        $region41: #{tpu_custom_call.1} parent=31 // pred_check
          %p277 = pneg %p276
        $region42: #{tpu_custom_call.1} parent=31 // pred_check_branch
          %279 = sbr.rel (%p277) target = $region44
        $region43: #{tpu_custom_call.1} parent=31 // pred_region
          %v280 = vld [vmem:[%s273] sm:$0x1]
          %v282 = vlaneseq
          %v283 = vshrl.u32 %v282, 7
          %v284 = vsub.s32 0, %v283
          %v285 = vrot.slane %v280, %v284
          %287 = vst [vmem:[#allocation2] sm:$0xff] %v285
          %288 = vst [vmem:[#allocation2 + $0x8] sm:$0xff] %v285
          %289 = vst [vmem:[#allocation2 + $0x10] sm:$0xff] %v285
          %290 = vst [vmem:[#allocation2 + $0x18] sm:$0xff] %v285
          %291 = vst [vmem:[#allocation2 + $0x20] sm:$0xff] %v285
          %292 = vst [vmem:[#allocation2 + $0x28] sm:$0xff] %v285
          %293 = vst [vmem:[#allocation2 + $0x30] sm:$0xff] %v285
          %294 = vst [vmem:[#allocation2 + $0x38] sm:$0xff] %v285
          %295 = vst [vmem:[#allocation2 + $0x40] sm:$0xff] %v285
          %296 = vst [vmem:[#allocation2 + $0x48] sm:$0xff] %v285
          %297 = vst [vmem:[#allocation2 + $0x50] sm:$0xff] %v285
          %298 = vst [vmem:[#allocation2 + $0x58] sm:$0xff] %v285
          %299 = vst [vmem:[#allocation2 + $0x60] sm:$0xff] %v285
          %300 = vst [vmem:[#allocation2 + $0x68] sm:$0xff] %v285
          %301 = vst [vmem:[#allocation2 + $0x70] sm:$0xff] %v285
          %302 = vst [vmem:[#allocation2 + $0x78] sm:$0xff] %v285
        $region44: #{tpu_custom_call.1} parent=31 // pred_fallthru
          _
        %v303 = vld [vmem:[#allocation2] sm:$0xff]
        %v304 = vld [vmem:[#allocation2 + $0x8] sm:$0xff]
        %v305 = vld [vmem:[#allocation2 + $0x10] sm:$0xff]
        %v306 = vld [vmem:[#allocation2 + $0x18] sm:$0xff]
        %v307 = vld [vmem:[#allocation2 + $0x20] sm:$0xff]
        %v308 = vld [vmem:[#allocation2 + $0x28] sm:$0xff]
        %v309 = vld [vmem:[#allocation2 + $0x30] sm:$0xff]
        %v310 = vld [vmem:[#allocation2 + $0x38] sm:$0xff]
        %v311 = vld [vmem:[#allocation2 + $0x40] sm:$0xff]
        %v312 = vld [vmem:[#allocation2 + $0x48] sm:$0xff]
        %v313 = vld [vmem:[#allocation2 + $0x50] sm:$0xff]
        %v314 = vld [vmem:[#allocation2 + $0x58] sm:$0xff]
        %v315 = vld [vmem:[#allocation2 + $0x60] sm:$0xff]
        %v316 = vld [vmem:[#allocation2 + $0x68] sm:$0xff]
        %v317 = vld [vmem:[#allocation2 + $0x70] sm:$0xff]
        %v318 = vld [vmem:[#allocation2 + $0x78] sm:$0xff]
        %v319 = vld [vmem:[%s229] sm:$0xf]
        %v320 = vld [vmem:[%s229 + $0x4] sm:$0xf]
        %v321 = vld [vmem:[%s229 + $0x8] sm:$0xf]
        %v322 = vld [vmem:[%s229 + $0xc] sm:$0xf]
        %v323 = vld [vmem:[%s229 + $0x10] sm:$0xf]
        %v324 = vld [vmem:[%s229 + $0x14] sm:$0xf]
        %v325 = vld [vmem:[%s229 + $0x18] sm:$0xf]
        %v326 = vld [vmem:[%s229 + $0x1c] sm:$0xf]
        %v327 = vld [vmem:[%s229 + $0x20] sm:$0xf]
        %v328 = vld [vmem:[%s229 + $0x24] sm:$0xf]
        %v329 = vld [vmem:[%s229 + $0x28] sm:$0xf]
        %v330 = vld [vmem:[%s229 + $0x2c] sm:$0xf]
        %v331 = vld [vmem:[%s229 + $0x30] sm:$0xf]
        %v332 = vld [vmem:[%s229 + $0x34] sm:$0xf]
        %v333 = vld [vmem:[%s229 + $0x38] sm:$0xf]
        %v334 = vld [vmem:[%s229 + $0x3c] sm:$0xf]
        %v335 = vld [vmem:[%s238] sm:$0xf]
        %v336 = vld [vmem:[%s238 + $0x4] sm:$0xf]
        %v337 = vld [vmem:[%s238 + $0x8] sm:$0xf]
        %v338 = vld [vmem:[%s238 + $0xc] sm:$0xf]
        %v339 = vld [vmem:[%s238 + $0x10] sm:$0xf]
        %v340 = vld [vmem:[%s238 + $0x14] sm:$0xf]
        %v341 = vld [vmem:[%s238 + $0x18] sm:$0xf]
        %v342 = vld [vmem:[%s238 + $0x1c] sm:$0xf]
        %v343 = vld [vmem:[%s238 + $0x20] sm:$0xf]
        %v344 = vld [vmem:[%s238 + $0x24] sm:$0xf]
        %v345 = vld [vmem:[%s238 + $0x28] sm:$0xf]
        %v346 = vld [vmem:[%s238 + $0x2c] sm:$0xf]
        %v347 = vld [vmem:[%s238 + $0x30] sm:$0xf]
        %v348 = vld [vmem:[%s238 + $0x34] sm:$0xf]
        %v349 = vld [vmem:[%s238 + $0x38] sm:$0xf]
        %v350 = vld [vmem:[%s238 + $0x3c] sm:$0xf]
        %v367 = vunpack.c.l.b16 %v319
        %v368 = vunpack.c.l.b16 %v320
        %v369 = vunpack.c.l.b16 %v321
        %v370 = vunpack.c.l.b16 %v322
        %v371 = vunpack.c.l.b16 %v323
        %v372 = vunpack.c.l.b16 %v324
        %v373 = vunpack.c.l.b16 %v325
        %v374 = vunpack.c.l.b16 %v326
        %v375 = vunpack.c.l.b16 %v327
        %v376 = vunpack.c.l.b16 %v328
        %v377 = vunpack.c.l.b16 %v329
        %v378 = vunpack.c.l.b16 %v330
        %v379 = vunpack.c.l.b16 %v331
        %v380 = vunpack.c.l.b16 %v332
        %v381 = vunpack.c.l.b16 %v333
        %v382 = vunpack.c.l.b16 %v334
        %v383 = vpack.c.b16 %v368, %v367
        %v384 = vpack.c.b16 %v370, %v369
        %v385 = vpack.c.b16 %v372, %v371
        %v386 = vpack.c.b16 %v374, %v373
        %v387 = vpack.c.b16 %v376, %v375
        %v388 = vpack.c.b16 %v378, %v377
        %v389 = vpack.c.b16 %v380, %v379
        %v390 = vpack.c.b16 %v382, %v381
        %v415 = vunpack.c.l.b16 %v335
        %v416 = vunpack.c.l.b16 %v336
        %v417 = vunpack.c.l.b16 %v337
        %v418 = vunpack.c.l.b16 %v338
        %v419 = vunpack.c.l.b16 %v339
        %v420 = vunpack.c.l.b16 %v340
        %v421 = vunpack.c.l.b16 %v341
        %v422 = vunpack.c.l.b16 %v342
        %v423 = vunpack.c.l.b16 %v343
        %v424 = vunpack.c.l.b16 %v344
        %v425 = vunpack.c.l.b16 %v345
        %v426 = vunpack.c.l.b16 %v346
        %v427 = vunpack.c.l.b16 %v347
        %v428 = vunpack.c.l.b16 %v348
        %v429 = vunpack.c.l.b16 %v349
        %v430 = vunpack.c.l.b16 %v350
        %v431 = vpack.c.b16 %v416, %v415
        %v432 = vpack.c.b16 %v418, %v417
        %v433 = vpack.c.b16 %v420, %v419
        %v434 = vpack.c.b16 %v422, %v421
        %v435 = vpack.c.b16 %v424, %v423
        %v436 = vpack.c.b16 %v426, %v425
        %v437 = vpack.c.b16 %v428, %v427
        %v438 = vpack.c.b16 %v430, %v429
        %447 = vmatprep.subr.bf16.mxu0 0
        %448 = vmatpush1.bf16.msra.mxu0 %v438
        %449 = vmatprep.subr.bf16.mxu0 0
        %450 = vmatpush1.bf16.msra.mxu0 %v437
        %451 = vmatprep.subr.bf16.mxu0 0
        %452 = vmatpush1.bf16.msra.mxu0 %v436
        %453 = vmatprep.subr.bf16.mxu0 0
        %454 = vmatpush1.bf16.msra.mxu0 %v435
        %455 = vmatprep.subr.bf16.mxu0 0
        %456 = vmatpush1.bf16.msra.mxu0 %v434
        %457 = vmatprep.subr.bf16.mxu0 0
        %458 = vmatpush1.bf16.msra.mxu0 %v433
        %459 = vmatprep.subr.bf16.mxu0 0
        %460 = vmatpush1.bf16.msra.mxu0 %v432
        %461 = vmatprep.subr.bf16.mxu0 0
        %462 = vmatpush1.bf16.msra.mxu0 %v431
        %463 = vmatprep.subr.bf16.mxu0 0
        %464 = vmatpush2.bf16.msra.mxu0 0
        %465 = vmatprep.subr.bf16.mxu0 0
        %466 = vmatpush2.bf16.msra.mxu0 0
        %467 = vmatprep.subr.bf16.mxu0 0
        %468 = vmatpush2.bf16.msra.mxu0 0
        %469 = vmatprep.subr.bf16.mxu0 0
        %470 = vmatpush2.bf16.msra.mxu0 0
        %471 = vmatprep.subr.bf16.mxu0 0
        %472 = vmatpush2.bf16.msra.mxu0 0
        %473 = vmatprep.subr.bf16.mxu0 0
        %474 = vmatpush2.bf16.msra.mxu0 0
        %475 = vmatprep.subr.bf16.mxu0 0
        %476 = vmatpush2.bf16.msra.mxu0 0
        %477 = vmatprep.subr.bf16.mxu0 0
        %478 = vmatpush2.bf16.msra.mxu0 0
        %479 = vmatprep.mubr.bf16.mxu0 0
        %480 = vmatmul.mubr.bf16.gmra.mxu0 %v383
        %v481 = vpop.f32.mrf.mxu0
        %v482 = vadd.f32 0.0, %v481
        %v483 = vpop.f32.mrf.mxu0
        %v484 = vpop.f32.mrf.mxu0
        %v485 = vadd.f32 0.0, %v484
        %v486 = vpop.f32.mrf.mxu0
        %487 = vmatprep.mubr.bf16.mxu0 0
        %488 = vmatmul.mubr.bf16.gmra.mxu0 %v384
        %v489 = vpop.f32.mrf.mxu0
        %v490 = vadd.f32 0.0, %v489
        %v491 = vpop.f32.mrf.mxu0
        %v492 = vpop.f32.mrf.mxu0
        %v493 = vadd.f32 0.0, %v492
        %v494 = vpop.f32.mrf.mxu0
        %495 = vmatprep.mubr.bf16.mxu0 0
        %496 = vmatmul.mubr.bf16.gmra.mxu0 %v385
        %v497 = vpop.f32.mrf.mxu0
        %v498 = vadd.f32 0.0, %v497
        %v499 = vpop.f32.mrf.mxu0
        %v500 = vpop.f32.mrf.mxu0
        %v501 = vadd.f32 0.0, %v500
        %v502 = vpop.f32.mrf.mxu0
        %503 = vmatprep.mubr.bf16.mxu0 0
        %504 = vmatmul.mubr.bf16.gmra.mxu0 %v386
        %v505 = vpop.f32.mrf.mxu0
        %v506 = vadd.f32 0.0, %v505
        %v507 = vpop.f32.mrf.mxu0
        %v508 = vpop.f32.mrf.mxu0
        %v509 = vadd.f32 0.0, %v508
        %v510 = vpop.f32.mrf.mxu0
        %511 = vmatprep.mubr.bf16.mxu0 0
        %512 = vmatmul.mubr.bf16.gmra.mxu0 %v387
        %v513 = vpop.f32.mrf.mxu0
        %v514 = vadd.f32 0.0, %v513
        %v515 = vpop.f32.mrf.mxu0
        %v516 = vpop.f32.mrf.mxu0
        %v517 = vadd.f32 0.0, %v516
        %v518 = vpop.f32.mrf.mxu0
        %519 = vmatprep.mubr.bf16.mxu0 0
        %520 = vmatmul.mubr.bf16.gmra.mxu0 %v388
        %v521 = vpop.f32.mrf.mxu0
        %v522 = vadd.f32 0.0, %v521
        %v523 = vpop.f32.mrf.mxu0
        %v524 = vpop.f32.mrf.mxu0
        %v525 = vadd.f32 0.0, %v524
        %v526 = vpop.f32.mrf.mxu0
        %527 = vmatprep.mubr.bf16.mxu0 0
        %528 = vmatmul.mubr.bf16.gmra.mxu0 %v389
        %v529 = vpop.f32.mrf.mxu0
        %v530 = vadd.f32 0.0, %v529
        %v531 = vpop.f32.mrf.mxu0
        %v532 = vpop.f32.mrf.mxu0
        %v533 = vadd.f32 0.0, %v532
        %v534 = vpop.f32.mrf.mxu0
        %535 = vmatprep.mubr.bf16.mxu0 0
        %536 = vmatmul.mubr.bf16.gmra.mxu0 %v390
        %v537 = vpop.f32.mrf.mxu0
        %v538 = vadd.f32 0.0, %v537
        %v539 = vpop.f32.mrf.mxu0
        %v540 = vpop.f32.mrf.mxu0
        %v541 = vadd.f32 0.0, %v540
        %v542 = vpop.f32.mrf.mxu0
        %543 = vdwg.mxu0
        %v544 = vadd.f32 %v303, %v482
        %v545 = vadd.f32 %v304, %v485
        %v546 = vadd.f32 %v305, %v490
        %v547 = vadd.f32 %v306, %v493
        %v548 = vadd.f32 %v307, %v498
        %v549 = vadd.f32 %v308, %v501
        %v550 = vadd.f32 %v309, %v506
        %v551 = vadd.f32 %v310, %v509
        %v552 = vadd.f32 %v311, %v514
        %v553 = vadd.f32 %v312, %v517
        %v554 = vadd.f32 %v313, %v522
        %v555 = vadd.f32 %v314, %v525
        %v556 = vadd.f32 %v315, %v530
        %v557 = vadd.f32 %v316, %v533
        %v558 = vadd.f32 %v317, %v538
        %v559 = vadd.f32 %v318, %v541
        %560 = vst [vmem:[#allocation2] sm:$0xff] %v544
        %561 = vst [vmem:[#allocation2 + $0x8] sm:$0xff] %v545
        %562 = vst [vmem:[#allocation2 + $0x10] sm:$0xff] %v546
        %563 = vst [vmem:[#allocation2 + $0x18] sm:$0xff] %v547
        %564 = vst [vmem:[#allocation2 + $0x20] sm:$0xff] %v548
        %565 = vst [vmem:[#allocation2 + $0x28] sm:$0xff] %v549
        %566 = vst [vmem:[#allocation2 + $0x30] sm:$0xff] %v550
        %567 = vst [vmem:[#allocation2 + $0x38] sm:$0xff] %v551
        %568 = vst [vmem:[#allocation2 + $0x40] sm:$0xff] %v552
        %569 = vst [vmem:[#allocation2 + $0x48] sm:$0xff] %v553
        %570 = vst [vmem:[#allocation2 + $0x50] sm:$0xff] %v554
        %571 = vst [vmem:[#allocation2 + $0x58] sm:$0xff] %v555
        %572 = vst [vmem:[#allocation2 + $0x60] sm:$0xff] %v556
        %573 = vst [vmem:[#allocation2 + $0x68] sm:$0xff] %v557
        %574 = vst [vmem:[#allocation2 + $0x70] sm:$0xff] %v558
        %575 = vst [vmem:[#allocation2 + $0x78] sm:$0xff] %v559
        %p576 = scmp.eq.s32.totalorder %s30, 1
        // Predicated region
        $region45: #{tpu_custom_call.1} parent=31 // pred_check
          %p577 = pneg %p576
        $region46: #{tpu_custom_call.1} parent=31 // pred_check_branch
          %579 = sbr.rel (%p577) target = $region48
        $region47: #{tpu_custom_call.1} parent=31 // pred_region
          %v580 = vld [vmem:[#allocation2] sm:$0xff]
          %v581 = vld [vmem:[#allocation2 + $0x8] sm:$0xff]
          %v582 = vld [vmem:[#allocation2 + $0x10] sm:$0xff]
          %v583 = vld [vmem:[#allocation2 + $0x18] sm:$0xff]
          %v584 = vld [vmem:[#allocation2 + $0x20] sm:$0xff]
          %v585 = vld [vmem:[#allocation2 + $0x28] sm:$0xff]
          %v586 = vld [vmem:[#allocation2 + $0x30] sm:$0xff]
          %v587 = vld [vmem:[#allocation2 + $0x38] sm:$0xff]
          %v588 = vld [vmem:[#allocation2 + $0x40] sm:$0xff]
          %v589 = vld [vmem:[#allocation2 + $0x48] sm:$0xff]
          %v590 = vld [vmem:[#allocation2 + $0x50] sm:$0xff]
          %v591 = vld [vmem:[#allocation2 + $0x58] sm:$0xff]
          %v592 = vld [vmem:[#allocation2 + $0x60] sm:$0xff]
          %v593 = vld [vmem:[#allocation2 + $0x68] sm:$0xff]
          %v594 = vld [vmem:[#allocation2 + $0x70] sm:$0xff]
          %v595 = vld [vmem:[#allocation2 + $0x78] sm:$0xff]
          %v596 = vmax.f32 %v580, 0.0
          %v597 = vmax.f32 %v581, 0.0
          %v598 = vmax.f32 %v582, 0.0
          %v599 = vmax.f32 %v583, 0.0
          %v600 = vmax.f32 %v584, 0.0
          %v601 = vmax.f32 %v585, 0.0
          %v602 = vmax.f32 %v586, 0.0
          %v603 = vmax.f32 %v587, 0.0
          %v604 = vmax.f32 %v588, 0.0
          %v605 = vmax.f32 %v589, 0.0
          %v606 = vmax.f32 %v590, 0.0
          %v607 = vmax.f32 %v591, 0.0
          %v608 = vmax.f32 %v592, 0.0
          %v609 = vmax.f32 %v593, 0.0
          %v610 = vmax.f32 %v594, 0.0
          %v611 = vmax.f32 %v595, 0.0
          %612 = vst [vmem:[%s268] sm:$0xff] %v596
          %613 = vst [vmem:[%s268 + $0x8] sm:$0xff] %v597
          %614 = vst [vmem:[%s268 + $0x10] sm:$0xff] %v598
          %615 = vst [vmem:[%s268 + $0x18] sm:$0xff] %v599
          %616 = vst [vmem:[%s268 + $0x20] sm:$0xff] %v600
          %617 = vst [vmem:[%s268 + $0x28] sm:$0xff] %v601
          %618 = vst [vmem:[%s268 + $0x30] sm:$0xff] %v602
          %619 = vst [vmem:[%s268 + $0x38] sm:$0xff] %v603
          %620 = vst [vmem:[%s268 + $0x40] sm:$0xff] %v604
          %621 = vst [vmem:[%s268 + $0x48] sm:$0xff] %v605
          %622 = vst [vmem:[%s268 + $0x50] sm:$0xff] %v606
          %623 = vst [vmem:[%s268 + $0x58] sm:$0xff] %v607
          %624 = vst [vmem:[%s268 + $0x60] sm:$0xff] %v608
          %625 = vst [vmem:[%s268 + $0x68] sm:$0xff] %v609
          %626 = vst [vmem:[%s268 + $0x70] sm:$0xff] %v610
          %627 = vst [vmem:[%s268 + $0x78] sm:$0xff] %v611
        $region48: #{tpu_custom_call.1} parent=31 // pred_fallthru
          _
        %s628 = sand.u32 %s134, 1
        %s629 = scalar_lea.sflag [#allocation5], %s628
        %s630 = sand.u32 %s134, 1
        %s631 = smul.addr %s630, 128
        %s632 = scalar_lea.vmem [#allocation8], %s631
        // Predicated region
        $region49: #{tpu_custom_call.1} parent=31 // pred_check
          %p633 = pneg %p144
        $region50: #{tpu_custom_call.1} parent=31 // pred_check_branch
          %635 = sbr.rel (%p633) target = $region52
        $region51: #{tpu_custom_call.1} parent=31 // pred_region
          %s636 = smul.u32 16, %s28
          %s638 = ssub.s32 2048, 2048
          %639 = vsyncadd %s629, %s638
          %s640 = smul.addr %s636, 2
          %s641 = sadd.s32 %s29, %s640
          %s642 = smul.addr %s641, 128
          %s643 = scalar_lea.hbm %s3, %s642
          %s644 = sshll.u32 %s632, 4
          %s645 = int_to_ptr.vmem [resolvable:$true] %s644
          %650 = dma.vmem_to_hbm [thread:$0]  %s645, 2048, %s643, %s629, 128, 256, 8
        $region52: #{tpu_custom_call.1} parent=31 // pred_fallthru
          _
      $region32: #{tpu_custom_call.1} parent=5 // pred_fallthru
        _
      %p651 = scmp.le.s32.totalorder 2, %s18
      // Predicated region
      $region53: #{tpu_custom_call.1} parent=5 // pred_check
        %p652 = pneg %p651
      $region54: #{tpu_custom_call.1} parent=5 // pred_check_branch
        %654 = sbr.rel (%p652) target = $region56
      $region55: #{tpu_custom_call.1} parent=5 // pred_region
        %s655 = ssub.s32 %s18, 2
        // Predicated region
        $region57: #{tpu_custom_call.1} parent=55 // pred_check
          %p656 = pneg %p150
        $region58: #{tpu_custom_call.1} parent=55 // pred_check_branch
          %658 = sbr.rel (%p656) target = $region60
        $region59: #{tpu_custom_call.1} parent=55 // pred_region
          %s659 = sand.u32 %s135, 1
          %s660 = scalar_lea.sflag [#allocation5], %s659
          %s661 = sand.u32 %s135, 1
          %s662 = smul.addr %s661, 128
          %s663 = scalar_lea.vmem [#allocation8], %s662
          %664 = dma.done %s660, 2048
        $region60: #{tpu_custom_call.1} parent=55 // pred_fallthru
          _
      $region56: #{tpu_custom_call.1} parent=5 // pred_fallthru
        _
    $region6: #{tpu_custom_call.1} parent=1 // loop_footer
      %s22 = sadd.s32 1, %s18
    $region7: #{tpu_custom_call.1} parent=1 // loop_footer_branch
      %17 = sbr.rel target = $region3
    $region8: #{tpu_custom_call.1} parent=1 // loop_exit
      _
    %665 = vsyncpa [#allocation4], 1
    %s666 = scalar_lea.sflag [#allocation4], 1
    %667 = vsyncpa %s666, 1
    %668 = vsyncpa [#allocation7], 1
    %s669 = scalar_lea.sflag [#allocation7], 1
    %670 = vsyncpa %s669, 1
    %671 = vsyncpa [#allocation5], 1
    %s672 = scalar_lea.sflag [#allocation5], 1
    %673 = vsyncpa %s672, 1

</llo_original>
